<compile_context>
chip_gen: v7x
topology: tpu7x:2x2x1
jax: 0.10.0
libtpu: 0.0.40
codegen_flags: <defaults>
</compile_context>

<pallas_src>
import jax
import jax.numpy as jnp
from jax.experimental import pallas as pl
from jax.experimental.pallas import tpu as pltpu


IN_FEATURES = 162
HIDDEN = 200
OUT_FEATURES = 2

# Lane-aligned (padded) sizes.
IN_PAD = 256      # 162 -> 2 * 128
HID_PAD = 256     # 200 -> 2 * 128
OUT_PAD = 128     # 2   -> 128 (lane-dense output; sliced back in the wrapper)


def _round_up(x, m):
    return (x + m - 1) // m * m


def mlp_kernel(x_ref, w1_ref, b1_ref, w2_ref, b2_ref, o_ref):
    # x/w1/w2 arrive as bf16 (MXU fast path); biases and accumulators are f32.
    x = x_ref[...]                                   # (TB, IN_PAD)  bf16
    w1 = w1_ref[...]                                 # (IN_PAD, HID_PAD) bf16
    b1 = b1_ref[...]                                 # (1, HID_PAD) f32
    w2 = w2_ref[...]                                 # (HID_PAD, OUT_PAD) bf16
    b2 = b2_ref[...]                                 # (1, OUT_PAD) f32

    # Linear(162, 200): bf16 operands, f32 accumulation on the MXU.
    h = jnp.dot(x, w1, preferred_element_type=jnp.float32) + b1
    # LeakyReLU(negative_slope=0.02): single VPU max (identical for slope in (0,1)).
    h = jnp.maximum(h, 0.02 * h)
    # Linear(200, 2-padded-to-128): bf16 operands, f32 accumulation.
    y = jnp.dot(h.astype(jnp.bfloat16), w2, preferred_element_type=jnp.float32) + b2
    # Sigmoid: exp + approximate reciprocal both issue on the (otherwise idle) EUP.
    o_ref[...] = pl.reciprocal(1.0 + jnp.exp(-y), approx=True).astype(o_ref.dtype)


def classifier_forward(x, w1, b1, w2, b2, *, block_b=512):
    """Forward pass.  x: (B, 162) f32; w1: (162, 200); b1: (1, 200);
    w2: (200, 2); b2: (1, 2).  Returns (B, 2) f32 sigmoid probabilities."""
    B = x.shape[0]

    # Batch tile: multiple of 8 sublanes, capped at block_b (>= 2 grid steps
    # for large B so v7x's two TensorCores both get work).
    block_b = _round_up(block_b, 8)
    TB = min(block_b, _round_up(B, 8))
    B_pad = _round_up(B, TB)

    # Zero-pad everything to lane-aligned slabs. Zero K-columns / K-rows
    # contribute nothing to the dots; padded output columns / batch rows are
    # sliced off below. x and the weights are streamed to the MXU as bf16.
    xp = jnp.zeros((B_pad, IN_PAD), jnp.bfloat16).at[:B, :IN_FEATURES].set(
        x.astype(jnp.bfloat16))
    w1p = jnp.zeros((IN_PAD, HID_PAD), jnp.bfloat16).at[:IN_FEATURES, :HIDDEN].set(
        w1.astype(jnp.bfloat16))
    b1p = jnp.zeros((1, HID_PAD), jnp.float32).at[:, :HIDDEN].set(
        b1.astype(jnp.float32))
    w2p = jnp.zeros((HID_PAD, OUT_PAD), jnp.bfloat16).at[:HIDDEN, :OUT_FEATURES].set(
        w2.astype(jnp.bfloat16))
    b2p = jnp.zeros((1, OUT_PAD), jnp.float32).at[:, :OUT_FEATURES].set(
        b2.astype(jnp.float32))

    out_pad = pl.pallas_call(
        mlp_kernel,
        out_shape=jax.ShapeDtypeStruct((B_pad, OUT_PAD), jnp.float32),
        grid_spec=pl.GridSpec(
            grid=(B_pad // TB,),
            in_specs=[
                pl.BlockSpec((TB, IN_PAD), lambda i: (i, 0)),        # x: streamed
                pl.BlockSpec((IN_PAD, HID_PAD), lambda i: (0, 0)),   # w1: resident
                pl.BlockSpec((1, HID_PAD), lambda i: (0, 0)),        # b1: resident
                pl.BlockSpec((HID_PAD, OUT_PAD), lambda i: (0, 0)),  # w2: resident
                pl.BlockSpec((1, OUT_PAD), lambda i: (0, 0)),        # b2: resident
            ],
            out_specs=pl.BlockSpec((TB, OUT_PAD), lambda i: (i, 0)), # lane-dense
        ),
        compiler_params=pltpu.CompilerParams(
            dimension_semantics=("parallel",),
        ),
    )(xp, w1p, b1p, w2p, b2p)

    return out_pad[:B, :OUT_FEATURES]


def reference_forward(x, w1, b1, w2, b2):
    h = x @ w1 + b1
    h = jnp.where(h >= 0, h, 0.02 * h)
    y = h @ w2 + b2
    return 1.0 / (1.0 + jnp.exp(-y))


if __name__ == "__main__":
    key = jax.random.PRNGKey(0)
    k_x, k_w1, k_b1, k_w2, k_b2, k_x2 = jax.random.split(key, 6)

    # Deterministic parameter init (PyTorch-style uniform(-1/sqrt(fan_in), 1/sqrt(fan_in)))
    bound1 = 1.0 / (IN_FEATURES ** 0.5)
    w1 = jax.random.uniform(k_w1, (IN_FEATURES, HIDDEN), jnp.float32, -bound1, bound1)
    b1 = jax.random.uniform(k_b1, (1, HIDDEN), jnp.float32, -bound1, bound1)

    bound2 = 1.0 / (HIDDEN ** 0.5)
    w2 = jax.random.uniform(k_w2, (HIDDEN, OUT_FEATURES), jnp.float32, -bound2, bound2)
    b2 = jax.random.uniform(k_b2, (1, OUT_FEATURES), jnp.float32, -bound2, bound2)

    # Small batch (single grid step).
    B = 8
    x = jax.random.normal(k_x, (B, IN_FEATURES), dtype=jnp.float32)
    out = jax.block_until_ready(classifier_forward(x, w1, b1, w2, b2))
    ref = reference_forward(x, w1, b1, w2, b2)
    assert out.shape == (B, OUT_FEATURES)
    # bf16 MXU operands + approximate reciprocal -> loose-but-safe tolerance.
    assert jnp.allclose(out, ref, atol=2e-2, rtol=2e-2)

    # Non-multiple-of-8 batch with multiple grid steps (exercises batch
    # padding + tiling + resident-weight path).
    B2 = 300
    x2 = jax.random.normal(k_x2, (B2, IN_FEATURES), dtype=jnp.float32)
    out2 = jax.block_until_ready(classifier_forward(x2, w1, b1, w2, b2, block_b=128))
    ref2 = reference_forward(x2, w1, b1, w2, b2)
    assert out2.shape == (B2, OUT_FEATURES)
    assert jnp.allclose(out2, ref2, atol=2e-2, rtol=2e-2)

    print("KERNEL_OK")
</pallas_src>

<mosaic_0001>
module attributes {stable_mosaic.version = 11 : i64} {
  func.func @mlp_kernel(%arg0: i32, %arg1: memref<8x256xbf16, #tpu.memory_space<vmem>>, %arg2: memref<256x256xbf16, #tpu.memory_space<vmem>>, %arg3: memref<1x256xf32, #tpu.memory_space<vmem>>, %arg4: memref<256x128xbf16, #tpu.memory_space<vmem>>, %arg5: memref<1x128xf32, #tpu.memory_space<vmem>>, %arg6: memref<8x128xf32, #tpu.memory_space<vmem>>) attributes {dimension_semantics = [#tpu.dimension_semantics<parallel>], iteration_bounds = array<i64: 1>, scalar_prefetch = 0 : i64, scratch_operands = 0 : i64, tpu.core_type = #tpu.core_type<tc>, window_params = [{transform_indices = @transform_0, window_bounds = array<i64: 8, 256>}, {pipeline_mode = #tpu.pipeline_mode<synchronous>, transform_indices = @transform_1, window_bounds = array<i64: 256, 256>}, {pipeline_mode = #tpu.pipeline_mode<synchronous>, transform_indices = @transform_2, window_bounds = array<i64: 1, 256>}, {pipeline_mode = #tpu.pipeline_mode<synchronous>, transform_indices = @transform_3, window_bounds = array<i64: 256, 128>}, {pipeline_mode = #tpu.pipeline_mode<synchronous>, transform_indices = @transform_4, window_bounds = array<i64: 1, 128>}, {transform_indices = @transform_5, window_bounds = array<i64: 8, 128>}]} {
    %c0 = arith.constant 0 : index
    %c0_0 = arith.constant 0 : index
    %0 = vector.load %arg1[%c0, %c0_0] : memref<8x256xbf16, #tpu.memory_space<vmem>>, vector<8x256xbf16>
    %c0_1 = arith.constant 0 : index
    %c0_2 = arith.constant 0 : index
    %1 = vector.load %arg2[%c0_1, %c0_2] : memref<256x256xbf16, #tpu.memory_space<vmem>>, vector<256x256xbf16>
    %c0_3 = arith.constant 0 : index
    %c0_4 = arith.constant 0 : index
    %2 = vector.load %arg3[%c0_3, %c0_4] : memref<1x256xf32, #tpu.memory_space<vmem>>, vector<1x256xf32>
    %c0_5 = arith.constant 0 : index
    %c0_6 = arith.constant 0 : index
    %3 = vector.load %arg4[%c0_5, %c0_6] : memref<256x128xbf16, #tpu.memory_space<vmem>>, vector<256x128xbf16>
    %c0_7 = arith.constant 0 : index
    %c0_8 = arith.constant 0 : index
    %4 = vector.load %arg5[%c0_7, %c0_8] : memref<1x128xf32, #tpu.memory_space<vmem>>, vector<1x128xf32>
    %cst = arith.constant dense<0.000000e+00> : vector<8x256xf32>
    %5 = tpu.matmul %0, %1, %cst {dimension_numbers = #tpu.dot_dimension_numbers<[1], [0], [0], [1], [0, 0, 1, 1], [], []>} : vector<8x256xbf16>, vector<256x256xbf16>, vector<8x256xf32> -> vector<8x256xf32>
    %6 = vector.broadcast %2 : vector<1x256xf32> to vector<8x256xf32>
    %7 = arith.addf %5, %6 : vector<8x256xf32>
    %cst_9 = arith.constant 2.000000e-02 : f32
    %8 = vector.broadcast %cst_9 : f32 to vector<8x256xf32>
    %9 = arith.mulf %8, %7 : vector<8x256xf32>
    %10 = arith.maximumf %7, %9 : vector<8x256xf32>
    %11 = arith.truncf %10 : vector<8x256xf32> to vector<8x256xbf16>
    %cst_10 = arith.constant dense<0.000000e+00> : vector<8x128xf32>
    %12 = tpu.matmul %11, %3, %cst_10 {dimension_numbers = #tpu.dot_dimension_numbers<[1], [0], [0], [1], [0, 0, 1, 1], [], []>} : vector<8x256xbf16>, vector<256x128xbf16>, vector<8x128xf32> -> vector<8x128xf32>
    %13 = vector.broadcast %4 : vector<1x128xf32> to vector<8x128xf32>
    %14 = arith.addf %12, %13 : vector<8x128xf32>
    %cst_11 = arith.constant 0.000000e+00 : f32
    %15 = vector.broadcast %cst_11 : f32 to vector<8x128xf32>
    %16 = arith.subf %15, %14 : vector<8x128xf32>
    %17 = math.exp %16 : vector<8x128xf32>
    %cst_12 = arith.constant 1.000000e+00 : f32
    %18 = vector.broadcast %cst_12 : f32 to vector<8x128xf32>
    %19 = arith.addf %18, %17 : vector<8x128xf32>
    %20 = tpu.reciprocal %19 {approx = true} : vector<8x128xf32> -> vector<8x128xf32>
    %c0_13 = arith.constant 0 : index
    %c0_14 = arith.constant 0 : index
    %21 = vector.load %arg6[%c0_13, %c0_14] : memref<8x128xf32, #tpu.memory_space<vmem>>, vector<8x128xf32>
    tpu.vector_store %arg6[%c0_13, %c0_14], %20 {strides = array<i32>} : memref<8x128xf32, #tpu.memory_space<vmem>>, vector<8x128xf32>,
    return
  }
  func.func @transform_0(%arg0: i32) -> (i32, i32) {
    %c0_i32 = arith.constant 0 : i32
    %c0_i32_0 = arith.constant 0 : i32
    return %arg0, %c0_i32 : i32, i32
  }
  func.func @transform_1(%arg0: i32) -> (i32, i32) {
    %c0_i32 = arith.constant 0 : i32
    %c0_i32_0 = arith.constant 0 : i32
    %c0_i32_1 = arith.constant 0 : i32
    return %c0_i32, %c0_i32_0 : i32, i32
  }
  func.func @transform_2(%arg0: i32) -> (i32, i32) {
    %c0_i32 = arith.constant 0 : i32
    %c0_i32_0 = arith.constant 0 : i32
    %c0_i32_1 = arith.constant 0 : i32
    return %c0_i32, %c0_i32_0 : i32, i32
  }
  func.func @transform_3(%arg0: i32) -> (i32, i32) {
    %c0_i32 = arith.constant 0 : i32
    %c0_i32_0 = arith.constant 0 : i32
    %c0_i32_1 = arith.constant 0 : i32
    return %c0_i32, %c0_i32_0 : i32, i32
  }
  func.func @transform_4(%arg0: i32) -> (i32, i32) {
    %c0_i32 = arith.constant 0 : i32
    %c0_i32_0 = arith.constant 0 : i32
    %c0_i32_1 = arith.constant 0 : i32
    return %c0_i32, %c0_i32_0 : i32, i32
  }
  func.func @transform_5(%arg0: i32) -> (i32, i32) {
    %c0_i32 = arith.constant 0 : i32
    %c0_i32_0 = arith.constant 0 : i32
    return %arg0, %c0_i32 : i32, i32
  }
}

</mosaic_0001>

<llo_original>
// kernel: tpu_custom_call.1
$region0: #{tpu_custom_call.1}
  #allocation0 [shape = 'u32[]', space=smem, size = 0x4, offset = 0x4, fixed_abs, tag = 'smem constant byte address 0x4 - core index']
  #allocation1 [shape = 'u32[144,128]{1,0:T(1,128)}', space=vmem, size = 0x12000, scoped, tag = 'internal scratch']
  %s0 = inlined_call_operand.hbm [shape: bf16[8,256], index: 0, kind: input, shape index: {}]
  %s1 = inlined_call_operand.hbm [shape: bf16[256,256], index: 1, kind: input, shape index: {}]
  %s2 = inlined_call_operand.vmem [shape: f32[1,256], index: 2, kind: input, shape index: {}]
  %s3 = inlined_call_operand.hbm [shape: bf16[256,128], index: 3, kind: input, shape index: {}]
  %s4 = inlined_call_operand.vmem [shape: f32[1,128], index: 4, kind: input, shape index: {}]
  %s5 = inlined_call_operand.hbm [shape: f32[8,128], index: 5, kind: output, shape index: {}]
  %s6 = sld [smem:[#allocation0]]
  $region42: #{tpu_custom_call.1} parent=0
    _
  %s8 = ssub.s32 1, %s6
  %s9 = scalar_select 0, %s8, %s6
  $region1: #{tpu_custom_call.1} parent=0
    #allocation2 [shape = 'u8[4096]{0}', space=vmem, size = 0x1000, scoped, tag = 'input window, operand 0, single buffered']
    #allocation3 [shape = 's32[1]{0}', space=sflag, size = 0x4, scoped, tag = 'scoped memory for tpu_custom_call.1']
    #allocation4 [shape = 's32[1]{0}', space=sflag, size = 0x4, scoped, tag = 'scoped memory for tpu_custom_call.1']
    #allocation5 [shape = 'u8[131072]{0}', space=vmem, size = 0x20000, scoped, tag = 'input window, operand 1, single buffered']
    #allocation6 [shape = 's32[1]{0}', space=sflag, size = 0x4, scoped, tag = 'scoped memory for tpu_custom_call.1']
    #allocation7 [shape = 'u8[65536]{0}', space=vmem, size = 0x10000, scoped, tag = 'input window, operand 3, single buffered']
    #allocation8 [shape = 'u8[4096]{0}', space=vmem, size = 0x1000, scoped, tag = 'output window, operand 0, single buffered']
    %10 = vsyncpa [#allocation3], 0
    %11 = vsyncpa [#allocation6], 0
    %12 = vsyncpa [#allocation4], 0
    // Predicated region
    $region2: #{tpu_custom_call.1} parent=1 // pred_check
      _
    $region3: #{tpu_custom_call.1} parent=1 // pred_check_branch
      %14 = sbr.rel (0) target = $region5
    $region4: #{tpu_custom_call.1} parent=1 // pred_region
      %s16 = ssub.s32 128, 128
      %17 = vsyncadd [#allocation3], %s16
      %s19 = sshll.u32 [#allocation2], 4
      %s20 = int_to_ptr.vmem [resolvable:$true] %s19
      %22 = dma.hbm_to_vmem [thread:$0]  %s0, 128, %s20, [#allocation3]
    $region5: #{tpu_custom_call.1} parent=1 // pred_fallthru
      _
    // Predicated region
    $region6: #{tpu_custom_call.1} parent=1 // pred_check
      _
    $region7: #{tpu_custom_call.1} parent=1 // pred_check_branch
      %24 = sbr.rel (0) target = $region9
    $region8: #{tpu_custom_call.1} parent=1 // pred_region
      %s26 = ssub.s32 4096, 4096
      %27 = vsyncadd [#allocation6], %s26
      %s28 = sshll.u32 [#allocation5], 4
      %s29 = int_to_ptr.vmem [resolvable:$true] %s28
      %34 = dma.hbm_to_vmem [thread:$0]  %s1, 4096, %s29, [#allocation6], 128, 128, 8
    $region9: #{tpu_custom_call.1} parent=1 // pred_fallthru
      _
    // Predicated region
    $region10: #{tpu_custom_call.1} parent=1 // pred_check
      _
    $region11: #{tpu_custom_call.1} parent=1 // pred_check_branch
      %36 = sbr.rel (0) target = $region13
    $region12: #{tpu_custom_call.1} parent=1 // pred_region
      _
    $region13: #{tpu_custom_call.1} parent=1 // pred_fallthru
      _
    // Predicated region
    $region14: #{tpu_custom_call.1} parent=1 // pred_check
      _
    $region15: #{tpu_custom_call.1} parent=1 // pred_check_branch
      %38 = sbr.rel (0) target = $region17
    $region16: #{tpu_custom_call.1} parent=1 // pred_region
      %s40 = ssub.s32 2048, 2048
      %41 = vsyncadd [#allocation6], %s40
      %s42 = sshll.u32 [#allocation7], 4
      %s43 = int_to_ptr.vmem [resolvable:$true] %s42
      %48 = dma.hbm_to_vmem [thread:$0]  %s3, 2048, %s43, [#allocation6], 64, 64, 4
    $region17: #{tpu_custom_call.1} parent=1 // pred_fallthru
      _
    // Predicated region
    $region18: #{tpu_custom_call.1} parent=1 // pred_check
      _
    $region19: #{tpu_custom_call.1} parent=1 // pred_check_branch
      %50 = sbr.rel (0) target = $region21
    $region20: #{tpu_custom_call.1} parent=1 // pred_region
      _
    $region21: #{tpu_custom_call.1} parent=1 // pred_fallthru
      _
    // Predicated region
    $region22: #{tpu_custom_call.1} parent=1 // pred_check
      _
    $region23: #{tpu_custom_call.1} parent=1 // pred_check_branch
      %52 = sbr.rel (0) target = $region25
    $region24: #{tpu_custom_call.1} parent=1 // pred_region
      %53 = dma.done [#allocation3], 128
    $region25: #{tpu_custom_call.1} parent=1 // pred_fallthru
      _
    // Predicated region
    $region26: #{tpu_custom_call.1} parent=1 // pred_check
      _
    $region27: #{tpu_custom_call.1} parent=1 // pred_check_branch
      %55 = sbr.rel (0) target = $region29
    $region28: #{tpu_custom_call.1} parent=1 // pred_region
      %56 = dma.done [#allocation6], 4096
    $region29: #{tpu_custom_call.1} parent=1 // pred_fallthru
      _
    // Predicated region
    $region30: #{tpu_custom_call.1} parent=1 // pred_check
      _
    $region31: #{tpu_custom_call.1} parent=1 // pred_check_branch
      %58 = sbr.rel (0) target = $region33
    $region32: #{tpu_custom_call.1} parent=1 // pred_region
      %59 = dma.done [#allocation6], 2048
    $region33: #{tpu_custom_call.1} parent=1 // pred_fallthru
      _
    %v61 = vld [vmem:[#allocation2] sm:$0xff]
    %v62 = vld [vmem:[#allocation5] sm:$0xff]
    %v63 = vld [vmem:[#allocation5 + $0x8] sm:$0xff]
    %v64 = vld [vmem:[#allocation5 + $0x10] sm:$0xff]
    %v65 = vld [vmem:[#allocation5 + $0x18] sm:$0xff]
    %v66 = vld [vmem:[#allocation5 + $0x20] sm:$0xff]
    %v67 = vld [vmem:[#allocation5 + $0x28] sm:$0xff]
    %v68 = vld [vmem:[#allocation5 + $0x30] sm:$0xff]
    %v69 = vld [vmem:[#allocation5 + $0x38] sm:$0xff]
    %v70 = vld [vmem:[#allocation5 + $0x40] sm:$0xff]
    %v71 = vld [vmem:[#allocation5 + $0x48] sm:$0xff]
    %v72 = vld [vmem:[#allocation5 + $0x50] sm:$0xff]
    %v73 = vld [vmem:[#allocation5 + $0x58] sm:$0xff]
    %v74 = vld [vmem:[#allocation5 + $0x60] sm:$0xff]
    %v75 = vld [vmem:[#allocation5 + $0x68] sm:$0xff]
    %v76 = vld [vmem:[#allocation5 + $0x70] sm:$0xff]
    %v77 = vld [vmem:[#allocation5 + $0x78] sm:$0xff]
    %v78 = vld [vmem:[#allocation5 + $0x80] sm:$0xff]
    %v79 = vld [vmem:[#allocation5 + $0x88] sm:$0xff]
    %v80 = vld [vmem:[#allocation5 + $0x90] sm:$0xff]
    %v81 = vld [vmem:[#allocation5 + $0x98] sm:$0xff]
    %v82 = vld [vmem:[#allocation5 + $0xa0] sm:$0xff]
    %v83 = vld [vmem:[#allocation5 + $0xa8] sm:$0xff]
    %v84 = vld [vmem:[#allocation5 + $0xb0] sm:$0xff]
    %v85 = vld [vmem:[#allocation5 + $0xb8] sm:$0xff]
    %v86 = vld [vmem:[#allocation5 + $0xc0] sm:$0xff]
    %v87 = vld [vmem:[#allocation5 + $0xc8] sm:$0xff]
    %v88 = vld [vmem:[#allocation5 + $0xd0] sm:$0xff]
    %v89 = vld [vmem:[#allocation5 + $0xd8] sm:$0xff]
    %v90 = vld [vmem:[#allocation5 + $0xe0] sm:$0xff]
    %v91 = vld [vmem:[#allocation5 + $0xe8] sm:$0xff]
    %v92 = vld [vmem:[#allocation5 + $0xf0] sm:$0xff]
    %v93 = vld [vmem:[#allocation5 + $0xf8] sm:$0xff]
    %v94 = vld [vmem:[%s2] sm:$0x3]
    %v95 = vld [vmem:[#allocation7] sm:$0xf]
    %v96 = vld [vmem:[#allocation7 + $0x4] sm:$0xf]
    %v97 = vld [vmem:[#allocation7 + $0x8] sm:$0xf]
    %v98 = vld [vmem:[#allocation7 + $0xc] sm:$0xf]
    %v99 = vld [vmem:[#allocation7 + $0x10] sm:$0xf]
    %v100 = vld [vmem:[#allocation7 + $0x14] sm:$0xf]
    %v101 = vld [vmem:[#allocation7 + $0x18] sm:$0xf]
    %v102 = vld [vmem:[#allocation7 + $0x1c] sm:$0xf]
    %v103 = vld [vmem:[#allocation7 + $0x20] sm:$0xf]
    %v104 = vld [vmem:[#allocation7 + $0x24] sm:$0xf]
    %v105 = vld [vmem:[#allocation7 + $0x28] sm:$0xf]
    %v106 = vld [vmem:[#allocation7 + $0x2c] sm:$0xf]
    %v107 = vld [vmem:[#allocation7 + $0x30] sm:$0xf]
    %v108 = vld [vmem:[#allocation7 + $0x34] sm:$0xf]
    %v109 = vld [vmem:[#allocation7 + $0x38] sm:$0xf]
    %v110 = vld [vmem:[#allocation7 + $0x3c] sm:$0xf]
    %v111 = vld [vmem:[#allocation7 + $0x40] sm:$0xf]
    %v112 = vld [vmem:[#allocation7 + $0x44] sm:$0xf]
    %v113 = vld [vmem:[#allocation7 + $0x48] sm:$0xf]
    %v114 = vld [vmem:[#allocation7 + $0x4c] sm:$0xf]
    %v115 = vld [vmem:[#allocation7 + $0x50] sm:$0xf]
    %v116 = vld [vmem:[#allocation7 + $0x54] sm:$0xf]
    %v117 = vld [vmem:[#allocation7 + $0x58] sm:$0xf]
    %v118 = vld [vmem:[#allocation7 + $0x5c] sm:$0xf]
    %v119 = vld [vmem:[#allocation7 + $0x60] sm:$0xf]
    %v120 = vld [vmem:[#allocation7 + $0x64] sm:$0xf]
    %v121 = vld [vmem:[#allocation7 + $0x68] sm:$0xf]
    %v122 = vld [vmem:[#allocation7 + $0x6c] sm:$0xf]
    %v123 = vld [vmem:[#allocation7 + $0x70] sm:$0xf]
    %v124 = vld [vmem:[#allocation7 + $0x74] sm:$0xf]
    %v125 = vld [vmem:[#allocation7 + $0x78] sm:$0xf]
    %v126 = vld [vmem:[#allocation7 + $0x7c] sm:$0xf]
    %v127 = vld [vmem:[%s4] sm:$0x1]
    %v129 = vlaneseq
    %v130 = vshrl.u32 %v129, 7
    %v131 = vsub.s32 0, %v130
    %v132 = vrot.slane %v94, %v131
    %v133 = vlaneseq
    %v134 = vshrl.u32 %v133, 7
    %v135 = vsub.s32 1, %v134
    %v136 = vrot.slane %v94, %v135
    %v140 = vunpack.c.l.b16 %v61
    %v141 = vunpack.c.h.b16 %v61
    %v142 = vpack.c.b16 %v140, %v140
    %v143 = vpack.c.b16 %v141, %v141
    %v178 = vunpack.c.l.b16 %v62
    %v179 = vunpack.c.h.b16 %v62
    %v180 = vunpack.c.l.b16 %v63
    %v181 = vunpack.c.h.b16 %v63
    %v182 = vunpack.c.l.b16 %v64
    %v183 = vunpack.c.h.b16 %v64
    %v184 = vunpack.c.l.b16 %v65
    %v185 = vunpack.c.h.b16 %v65
    %v186 = vunpack.c.l.b16 %v66
    %v187 = vunpack.c.h.b16 %v66
    %v188 = vunpack.c.l.b16 %v67
    %v189 = vunpack.c.h.b16 %v67
    %v190 = vunpack.c.l.b16 %v68
    %v191 = vunpack.c.h.b16 %v68
    %v192 = vunpack.c.l.b16 %v69
    %v193 = vunpack.c.h.b16 %v69
    %v194 = vunpack.c.l.b16 %v70
    %v195 = vunpack.c.h.b16 %v70
    %v196 = vunpack.c.l.b16 %v71
    %v197 = vunpack.c.h.b16 %v71
    %v198 = vunpack.c.l.b16 %v72
    %v199 = vunpack.c.h.b16 %v72
    %v200 = vunpack.c.l.b16 %v73
    %v201 = vunpack.c.h.b16 %v73
    %v202 = vunpack.c.l.b16 %v74
    %v203 = vunpack.c.h.b16 %v74
    %v204 = vunpack.c.l.b16 %v75
    %v205 = vunpack.c.h.b16 %v75
    %v206 = vunpack.c.l.b16 %v76
    %v207 = vunpack.c.h.b16 %v76
    %v208 = vunpack.c.l.b16 %v77
    %v209 = vunpack.c.h.b16 %v77
    %v210 = vunpack.c.l.b16 %v78
    %v211 = vunpack.c.h.b16 %v78
    %v212 = vunpack.c.l.b16 %v79
    %v213 = vunpack.c.h.b16 %v79
    %v214 = vunpack.c.l.b16 %v80
    %v215 = vunpack.c.h.b16 %v80
    %v216 = vunpack.c.l.b16 %v81
    %v217 = vunpack.c.h.b16 %v81
    %v218 = vunpack.c.l.b16 %v82
    %v219 = vunpack.c.h.b16 %v82
    %v220 = vunpack.c.l.b16 %v83
    %v221 = vunpack.c.h.b16 %v83
    %v222 = vunpack.c.l.b16 %v84
    %v223 = vunpack.c.h.b16 %v84
    %v224 = vunpack.c.l.b16 %v85
    %v225 = vunpack.c.h.b16 %v85
    %v226 = vunpack.c.l.b16 %v86
    %v227 = vunpack.c.h.b16 %v86
    %v228 = vunpack.c.l.b16 %v87
    %v229 = vunpack.c.h.b16 %v87
    %v230 = vunpack.c.l.b16 %v88
    %v231 = vunpack.c.h.b16 %v88
    %v232 = vunpack.c.l.b16 %v89
    %v233 = vunpack.c.h.b16 %v89
    %v234 = vunpack.c.l.b16 %v90
    %v235 = vunpack.c.h.b16 %v90
    %v236 = vunpack.c.l.b16 %v91
    %v237 = vunpack.c.h.b16 %v91
    %v238 = vunpack.c.l.b16 %v92
    %v239 = vunpack.c.h.b16 %v92
    %v240 = vunpack.c.l.b16 %v93
    %v241 = vunpack.c.h.b16 %v93
    %v242 = vpack.c.b16 %v180, %v178
    %v243 = vpack.c.b16 %v181, %v179
    %v244 = vpack.c.b16 %v184, %v182
    %v245 = vpack.c.b16 %v185, %v183
    %v246 = vpack.c.b16 %v188, %v186
    %v247 = vpack.c.b16 %v189, %v187
    %v248 = vpack.c.b16 %v192, %v190
    %v249 = vpack.c.b16 %v193, %v191
    %v250 = vpack.c.b16 %v196, %v194
    %v251 = vpack.c.b16 %v197, %v195
    %v252 = vpack.c.b16 %v200, %v198
    %v253 = vpack.c.b16 %v201, %v199
    %v254 = vpack.c.b16 %v204, %v202
    %v255 = vpack.c.b16 %v205, %v203
    %v256 = vpack.c.b16 %v208, %v206
    %v257 = vpack.c.b16 %v209, %v207
    %v258 = vpack.c.b16 %v212, %v210
    %v259 = vpack.c.b16 %v213, %v211
    %v260 = vpack.c.b16 %v216, %v214
    %v261 = vpack.c.b16 %v217, %v215
    %v262 = vpack.c.b16 %v220, %v218
    %v263 = vpack.c.b16 %v221, %v219
    %v264 = vpack.c.b16 %v224, %v222
    %v265 = vpack.c.b16 %v225, %v223
    %v266 = vpack.c.b16 %v228, %v226
    %v267 = vpack.c.b16 %v229, %v227
    %v268 = vpack.c.b16 %v232, %v230
    %v269 = vpack.c.b16 %v233, %v231
    %v270 = vpack.c.b16 %v236, %v234
    %v271 = vpack.c.b16 %v237, %v235
    %v272 = vpack.c.b16 %v240, %v238
    %v273 = vpack.c.b16 %v241, %v239
    %306 = vmatprep.subr.bf16.mxu0 %v243
    %307 = vmatpush1.bf16.msra.mxu0 %v242
    %308 = vmatprep.subr.bf16.mxu0 %v245
    %309 = vmatpush1.bf16.msra.mxu0 %v244
    %310 = vmatprep.subr.bf16.mxu0 %v247
    %311 = vmatpush1.bf16.msra.mxu0 %v246
    %312 = vmatprep.subr.bf16.mxu0 %v249
    %313 = vmatpush1.bf16.msra.mxu0 %v248
    %314 = vmatprep.subr.bf16.mxu0 %v251
    %315 = vmatpush1.bf16.msra.mxu0 %v250
    %316 = vmatprep.subr.bf16.mxu0 %v253
    %317 = vmatpush1.bf16.msra.mxu0 %v252
    %318 = vmatprep.subr.bf16.mxu0 %v255
    %319 = vmatpush1.bf16.msra.mxu0 %v254
    %320 = vmatprep.subr.bf16.mxu0 %v257
    %321 = vmatpush1.bf16.msra.mxu0 %v256
    %322 = vmatprep.subr.bf16.mxu0 %v259
    %323 = vmatpush1.bf16.msra.mxu0 %v258
    %324 = vmatprep.subr.bf16.mxu0 %v261
    %325 = vmatpush1.bf16.msra.mxu0 %v260
    %326 = vmatprep.subr.bf16.mxu0 %v263
    %327 = vmatpush1.bf16.msra.mxu0 %v262
    %328 = vmatprep.subr.bf16.mxu0 %v265
    %329 = vmatpush1.bf16.msra.mxu0 %v264
    %330 = vmatprep.subr.bf16.mxu0 %v267
    %331 = vmatpush1.bf16.msra.mxu0 %v266
    %332 = vmatprep.subr.bf16.mxu0 %v269
    %333 = vmatpush1.bf16.msra.mxu0 %v268
    %334 = vmatprep.subr.bf16.mxu0 %v271
    %335 = vmatpush1.bf16.msra.mxu0 %v270
    %336 = vmatprep.subr.bf16.mxu0 %v273
    %337 = vmatpush1.bf16.msra.mxu0 %v272
    %338 = vmatprep.mubr.bf16.mxu0 %v143
    %339 = vmatmul.mubr.bf16.gmra.mrb[0].mxu0 %v142
    %v340 = vpop.f32.mrb[0].mxu0
    %v341 = vadd.f32 %v132, %v340
    %v342 = vpop.f32.mrb[0].mxu0
    %v343 = vadd.f32 %v136, %v342
    %v344 = vpop.f32.mrb[0].mxu0
    %v345 = vpop.f32.mrb[0].mxu0
    %346 = vdwg.mxu0
    %v347 = vmul.f32 %v341, 0.02
    %v348 = vmul.f32 %v343, 0.02
    %v349 = vmax.f32 %v341, %v347
    %v350 = vmax.f32 %v343, %v348
    %v351 = vpack.c.bf16 %v349, %v349
    %v352 = vpack.c.bf16 %v350, %v350
    %v354 = vlaneseq
    %v355 = vshrl.u32 %v354, 7
    %v356 = vsub.s32 0, %v355
    %v357 = vrot.slane %v127, %v356
    %v391 = vunpack.c.l.b16 %v95
    %v392 = vunpack.c.l.b16 %v96
    %v393 = vunpack.c.l.b16 %v97
    %v394 = vunpack.c.l.b16 %v98
    %v395 = vunpack.c.l.b16 %v99
    %v396 = vunpack.c.l.b16 %v100
    %v397 = vunpack.c.l.b16 %v101
    %v398 = vunpack.c.l.b16 %v102
    %v399 = vunpack.c.l.b16 %v103
    %v400 = vunpack.c.l.b16 %v104
    %v401 = vunpack.c.l.b16 %v105
    %v402 = vunpack.c.l.b16 %v106
    %v403 = vunpack.c.l.b16 %v107
    %v404 = vunpack.c.l.b16 %v108
    %v405 = vunpack.c.l.b16 %v109
    %v406 = vunpack.c.l.b16 %v110
    %v407 = vunpack.c.l.b16 %v111
    %v408 = vunpack.c.l.b16 %v112
    %v409 = vunpack.c.l.b16 %v113
    %v410 = vunpack.c.l.b16 %v114
    %v411 = vunpack.c.l.b16 %v115
    %v412 = vunpack.c.l.b16 %v116
    %v413 = vunpack.c.l.b16 %v117
    %v414 = vunpack.c.l.b16 %v118
    %v415 = vunpack.c.l.b16 %v119
    %v416 = vunpack.c.l.b16 %v120
    %v417 = vunpack.c.l.b16 %v121
    %v418 = vunpack.c.l.b16 %v122
    %v419 = vunpack.c.l.b16 %v123
    %v420 = vunpack.c.l.b16 %v124
    %v421 = vunpack.c.l.b16 %v125
    %v422 = vunpack.c.l.b16 %v126
    %v423 = vpack.c.b16 %v392, %v391
    %v424 = vpack.c.b16 %v394, %v393
    %v425 = vpack.c.b16 %v396, %v395
    %v426 = vpack.c.b16 %v398, %v397
    %v427 = vpack.c.b16 %v400, %v399
    %v428 = vpack.c.b16 %v402, %v401
    %v429 = vpack.c.b16 %v404, %v403
    %v430 = vpack.c.b16 %v406, %v405
    %v431 = vpack.c.b16 %v408, %v407
    %v432 = vpack.c.b16 %v410, %v409
    %v433 = vpack.c.b16 %v412, %v411
    %v434 = vpack.c.b16 %v414, %v413
    %v435 = vpack.c.b16 %v416, %v415
    %v436 = vpack.c.b16 %v418, %v417
    %v437 = vpack.c.b16 %v420, %v419
    %v438 = vpack.c.b16 %v422, %v421
    %455 = vmatprep.subr.bf16.mxu0 0
    %456 = vmatpush1.bf16.msra.mxu0 %v423
    %457 = vmatprep.subr.bf16.mxu0 0
    %458 = vmatpush1.bf16.msra.mxu0 %v424
    %459 = vmatprep.subr.bf16.mxu0 0
    %460 = vmatpush1.bf16.msra.mxu0 %v425
    %461 = vmatprep.subr.bf16.mxu0 0
    %462 = vmatpush1.bf16.msra.mxu0 %v426
    %463 = vmatprep.subr.bf16.mxu0 0
    %464 = vmatpush1.bf16.msra.mxu0 %v427
    %465 = vmatprep.subr.bf16.mxu0 0
    %466 = vmatpush1.bf16.msra.mxu0 %v428
    %467 = vmatprep.subr.bf16.mxu0 0
    %468 = vmatpush1.bf16.msra.mxu0 %v429
    %469 = vmatprep.subr.bf16.mxu0 0
    %470 = vmatpush1.bf16.msra.mxu0 %v430
    %471 = vmatprep.subr.bf16.mxu0 0
    %472 = vmatpush1.bf16.msra.mxu0 %v431
    %473 = vmatprep.subr.bf16.mxu0 0
    %474 = vmatpush1.bf16.msra.mxu0 %v432
    %475 = vmatprep.subr.bf16.mxu0 0
    %476 = vmatpush1.bf16.msra.mxu0 %v433
    %477 = vmatprep.subr.bf16.mxu0 0
    %478 = vmatpush1.bf16.msra.mxu0 %v434
    %479 = vmatprep.subr.bf16.mxu0 0
    %480 = vmatpush1.bf16.msra.mxu0 %v435
    %481 = vmatprep.subr.bf16.mxu0 0
    %482 = vmatpush1.bf16.msra.mxu0 %v436
    %483 = vmatprep.subr.bf16.mxu0 0
    %484 = vmatpush1.bf16.msra.mxu0 %v437
    %485 = vmatprep.subr.bf16.mxu0 0
    %486 = vmatpush1.bf16.msra.mxu0 %v438
    %487 = vmatprep.mubr.bf16.mxu0 %v352
    %488 = vmatmul.mubr.bf16.gmra.mrb[0].mxu0 %v351
    %v489 = vpop.f32.mrb[0].mxu0
    %v490 = vadd.f32 %v357, %v489
    %v491 = vpop.f32.mrb[0].mxu0
    %v492 = vpop.f32.mrb[0].mxu0
    %v493 = vpop.f32.mrb[0].mxu0
    %494 = vdwg.mxu0
    %v495 = vsub.f32 0.0, %v490
    %v496 = vmul.f32 %v495, 1.442695
    %v497 = vpow.pop %v496
    %v498 = vadd.f32 %v497, 1.0
    %v499 = vrcp.pop %v498
    %500 = vst [vmem:[#allocation8] sm:$0xff] %v499
    // Predicated region
    $region34: #{tpu_custom_call.1} parent=1 // pred_check
      _
    $region35: #{tpu_custom_call.1} parent=1 // pred_check_branch
      %502 = sbr.rel (0) target = $region37
    $region36: #{tpu_custom_call.1} parent=1 // pred_region
      %s504 = ssub.s32 128, 128
      %505 = vsyncadd [#allocation4], %s504
      %s507 = sshll.u32 [#allocation8], 4
      %s508 = int_to_ptr.vmem [resolvable:$true] %s507
      %510 = dma.vmem_to_hbm [thread:$0]  %s508, 128, %s5, [#allocation4]
    $region37: #{tpu_custom_call.1} parent=1 // pred_fallthru
      _
    // Predicated region
    $region38: #{tpu_custom_call.1} parent=1 // pred_check
      _
    $region39: #{tpu_custom_call.1} parent=1 // pred_check_branch
      %512 = sbr.rel (0) target = $region41
    $region40: #{tpu_custom_call.1} parent=1 // pred_region
      %513 = dma.done [#allocation4], 128
    $region41: #{tpu_custom_call.1} parent=1 // pred_fallthru
      _
    %514 = vsyncpa [#allocation3], 1
    %515 = vsyncpa [#allocation6], 1
    %516 = vsyncpa [#allocation4], 1

</llo_original>
